<compile_context>
chip_gen: v7x
topology: tpu7x:2x2x1
jax: 0.10.0
libtpu: 0.0.40
codegen_flags: <defaults>
</compile_context>

<pallas_src>
import functools

import jax
import jax.numpy as jnp
from jax.experimental import pallas as pl
from jax.experimental.pallas import tpu as pltpu

SOFTMAX_EPS = 1e-5     # default eps of Softmax.forward
LOSS_EPS = 1e-5        # default eps of SoftmaxHeteroscedasticLoss.forward
KEEP_VAR = 0.001       # keep_variance_fn = lambda x: x + 0.001


def _choose_tile(hw, itemsize):
    """Pick a lane tile (multiple of 128) and the padded spatial extent.

    Cap at 8192 lanes for <=2-byte inputs, 4096 for f32 (keeps double-buffered
    blocks + live (C,TILE) f32 temporaries comfortably inside scoped VMEM on all
    of v5e / v6e / v7x)."""
    cap = 8192 if itemsize <= 2 else 4096
    hw128 = ((hw + 127) // 128) * 128
    # Prefer a large tile that divides the 128-padded extent exactly.
    for t in range(min(cap, hw128), 127, -128):
        if hw128 % t == 0 and t >= 1024:
            return t, hw128
    # Fallback: pad up to a multiple of a fixed tile (small HW, or awkward factors).
    t = min(cap, hw128)
    return t, ((hw + t - 1) // t) * t


def _loss_kernel(tgt_ref, mean_ref, var_ref, out_ref, *, hw, tile):
    s = pl.program_id(1)

    # Upcast after load: HBM/DMA traffic stays in the input dtype (e.g. bf16).
    fm = mean_ref[0].astype(jnp.float32)     # (C, TILE)
    fv = var_ref[0].astype(jnp.float32)      # (C, TILE)

    # ADF softmax over the channel axis (axis 0 of the tile).
    lg_mean = jnp.exp(fm + 0.5 * fv)                          # 1 EUP exp
    lg_var = (lg_mean * lg_mean) * (jnp.exp(fv) - 1.0)        # 1 EUP exp, VPU muls
    const = jnp.sum(lg_mean, axis=0, keepdims=True) + SOFTMAX_EPS   # XLU sublane reduce
    inv_const = pl.reciprocal(const)                          # single (1,TILE) recip
    out_mean = lg_mean * inv_const
    out_var = lg_var * (inv_const * inv_const) + KEEP_VAR     # keep_variance_fn

    # diff = one_hot(targets) - mean, built with one select (no float one-hot).
    tgt = tgt_ref[0]                                          # (1, TILE) int32
    class_ids = jax.lax.broadcasted_iota(jnp.int32, fm.shape, 0)
    diff = jnp.where(class_ids == tgt, 1.0 - out_mean, -out_mean)

    var_eps = out_var + LOSS_EPS
    inv_var = pl.reciprocal(var_eps)   # exact: Newton FMAs are plain VPU ops
    # 0.5 factors are folded into the final wrapper-side scale.
    term = diff * diff * inv_var + jnp.log(var_eps)

    if hw % tile != 0:
        # Spatial extent was padded to a multiple of the tile: zero the padded lanes.
        lane = jax.lax.broadcasted_iota(jnp.int32, fm.shape, 1)
        pos = s * tile + lane
        term = jnp.where(pos < hw, term, 0.0)

    # Per-(n, s) partial sum -> lane-dense output block.  No cross-step state,
    # so both grid axes are independent ("parallel" x "parallel").
    psum = jnp.sum(term)
    out_ref[...] = jnp.broadcast_to(psum, out_ref.shape).astype(out_ref.dtype)


@functools.partial(jax.jit, static_argnames=("num_classes",))
def softmax_heteroscedastic_loss(features_mean, features_variance, targets,
                                 num_classes=20):
    """features_mean/features_variance: (N, C, H, W) float; targets: (N, H, W) int."""
    N, C, H, W = features_mean.shape
    assert C == num_classes
    HW = H * W

    # Keep the model's dtype (bf16 stays bf16 in HBM); upcast inside the kernel.
    mean = features_mean.reshape(N, C, HW)
    var = features_variance.reshape(N, C, HW)
    tgt = targets.reshape(N, 1, HW).astype(jnp.int32)

    tile, hw_pad = _choose_tile(HW, jnp.dtype(features_mean.dtype).itemsize)
    if hw_pad != HW:
        pad = hw_pad - HW
        mean = jnp.pad(mean, ((0, 0), (0, 0), (0, pad)))
        var = jnp.pad(var, ((0, 0), (0, 0), (0, pad)))
        tgt = jnp.pad(tgt, ((0, 0), (0, 0), (0, pad)))

    num_s = hw_pad // tile
    grid = (N, num_s)
    kernel = functools.partial(_loss_kernel, hw=HW, tile=tile)

    partials = pl.pallas_call(
        kernel,
        out_shape=jax.ShapeDtypeStruct((N, num_s, 8, 128), jnp.float32),
        grid_spec=pltpu.PrefetchScalarGridSpec(
            num_scalar_prefetch=0,
            grid=grid,
            in_specs=[
                pl.BlockSpec((1, 1, tile), lambda n, s: (n, 0, s)),   # targets
                pl.BlockSpec((1, C, tile), lambda n, s: (n, 0, s)),   # mean
                pl.BlockSpec((1, C, tile), lambda n, s: (n, 0, s)),   # variance
            ],
            out_specs=pl.BlockSpec((1, 1, 8, 128), lambda n, s: (n, s, 0, 0)),
        ),
        compiler_params=pltpu.CompilerParams(
            dimension_semantics=("parallel", "parallel"),
            vmem_limit_bytes=48 * 1024 * 1024),
    )(tgt, mean, var)

    total = jnp.sum(partials[:, :, 0, 0])
    # The 0.5 from both loss terms is applied here, once.
    return 0.5 * total / jnp.float32(N * C * H * W)


def _reference_loss(features_mean, features_variance, targets, num_classes=20):
    """Plain-JAX transcription of the PyTorch module (for correctness check)."""
    fm = features_mean.astype(jnp.float32)
    fv = features_variance.astype(jnp.float32)
    lg_mean_pre = fm + 0.5 * fv
    lg_mean = jnp.exp(lg_mean_pre)
    lg_var = jnp.exp(2.0 * lg_mean_pre) * (jnp.exp(fv) - 1.0)
    const = jnp.sum(lg_mean, axis=1, keepdims=True) + SOFTMAX_EPS
    out_mean = lg_mean / const
    out_var = lg_var / const**2 + KEEP_VAR
    onehot = jax.nn.one_hot(targets, num_classes, dtype=jnp.float32)       # (N,H,W,C)
    onehot = jnp.transpose(onehot, (0, 3, 1, 2))                           # NCHW
    precision = 1.0 / (out_var + LOSS_EPS)
    return jnp.mean(0.5 * precision * (onehot - out_mean) ** 2
                    + 0.5 * jnp.log(out_var + LOSS_EPS))


if __name__ == "__main__":
    NUM_CLASSES = 20
    key = jax.random.PRNGKey(0)

    # Case 1: 128-divisible spatial extent (no padding path).
    N, C, H, W = 2, NUM_CLASSES, 16, 16
    k_mean, k_var, k_tgt, key = jax.random.split(key, 4)
    features_mean = jax.random.normal(k_mean, (N, C, H, W), dtype=jnp.float32)
    features_variance = jax.nn.softplus(
        jax.random.normal(k_var, (N, C, H, W), dtype=jnp.float32)) * 0.5
    targets = jax.random.randint(k_tgt, (N, H, W), 0, NUM_CLASSES, dtype=jnp.int32)

    loss = softmax_heteroscedastic_loss(features_mean, features_variance, targets,
                                        num_classes=NUM_CLASSES)
    loss = jax.block_until_ready(loss)
    ref = _reference_loss(features_mean, features_variance, targets, NUM_CLASSES)
    assert jnp.allclose(loss, ref, rtol=1e-5, atol=1e-5), (loss, ref)

    # Case 2: non-128-divisible spatial extent (exercises padding + lane masking).
    N2, H2, W2 = 2, 10, 10
    k_mean, k_var, k_tgt, key = jax.random.split(key, 4)
    fm2 = jax.random.normal(k_mean, (N2, NUM_CLASSES, H2, W2), dtype=jnp.float32)
    fv2 = jax.nn.softplus(
        jax.random.normal(k_var, (N2, NUM_CLASSES, H2, W2), dtype=jnp.float32)) * 0.5
    tg2 = jax.random.randint(k_tgt, (N2, H2, W2), 0, NUM_CLASSES, dtype=jnp.int32)

    loss2 = softmax_heteroscedastic_loss(fm2, fv2, tg2, num_classes=NUM_CLASSES)
    loss2 = jax.block_until_ready(loss2)
    ref2 = _reference_loss(fm2, fv2, tg2, NUM_CLASSES)
    assert jnp.allclose(loss2, ref2, rtol=1e-5, atol=1e-5), (loss2, ref2)

    print("KERNEL_OK")
</pallas_src>

<mosaic_0001>
module attributes {stable_mosaic.version = 11 : i64} {
  func.func @_loss_kernel(%arg0: i32, %arg1: i32, %arg2: memref<1x1x256xi32, #tpu.memory_space<vmem>>, %arg3: memref<1x20x256xf32, #tpu.memory_space<vmem>>, %arg4: memref<1x20x256xf32, #tpu.memory_space<vmem>>, %arg5: memref<1x1x8x128xf32, #tpu.memory_space<vmem>>) attributes {dimension_semantics = [#tpu.dimension_semantics<parallel>, #tpu.dimension_semantics<parallel>], iteration_bounds = array<i64: 2, 1>, scalar_prefetch = 0 : i64, scratch_operands = 0 : i64, tpu.core_type = #tpu.core_type<tc>, window_params = [{transform_indices = @transform_0, window_bounds = array<i64: 1, 1, 256>}, {transform_indices = @transform_1, window_bounds = array<i64: 1, 20, 256>}, {transform_indices = @transform_2, window_bounds = array<i64: 1, 20, 256>}, {transform_indices = @transform_3, window_bounds = array<i64: 1, 1, 8, 128>}]} {
    %c0 = arith.constant 0 : index
    %c0_0 = arith.constant 0 : index
    %c0_1 = arith.constant 0 : index
    %0 = vector.load %arg3[%c0, %c0_0, %c0_1] : memref<1x20x256xf32, #tpu.memory_space<vmem>>, vector<1x20x256xf32>
    %1 = vector.shape_cast %0 : vector<1x20x256xf32> to vector<20x256xf32>
    %c0_2 = arith.constant 0 : index
    %c0_3 = arith.constant 0 : index
    %c0_4 = arith.constant 0 : index
    %2 = vector.load %arg4[%c0_2, %c0_3, %c0_4] : memref<1x20x256xf32, #tpu.memory_space<vmem>>, vector<1x20x256xf32>
    %3 = vector.shape_cast %2 : vector<1x20x256xf32> to vector<20x256xf32>
    %cst = arith.constant 5.000000e-01 : f32
    %4 = vector.broadcast %cst : f32 to vector<20x256xf32>
    %5 = arith.mulf %4, %3 : vector<20x256xf32>
    %6 = arith.addf %1, %5 : vector<20x256xf32>
    %7 = math.exp %6 : vector<20x256xf32>
    %8 = arith.mulf %7, %7 : vector<20x256xf32>
    %9 = math.exp %3 : vector<20x256xf32>
    %cst_5 = arith.constant 1.000000e+00 : f32
    %10 = vector.broadcast %cst_5 : f32 to vector<20x256xf32>
    %11 = arith.subf %9, %10 : vector<20x256xf32>
    %12 = arith.mulf %8, %11 : vector<20x256xf32>
    %cst_6 = arith.constant dense<0.000000e+00> : vector<256xf32>
    %13 = vector.multi_reduction <add>, %7, %cst_6 [0] : vector<20x256xf32> to vector<256xf32>
    %14 = vector.shape_cast %13 : vector<256xf32> to vector<1x256xf32>
    %cst_7 = arith.constant 9.99999974E-6 : f32
    %15 = vector.broadcast %cst_7 : f32 to vector<1x256xf32>
    %16 = arith.addf %14, %15 : vector<1x256xf32>
    %17 = tpu.reciprocal %16 : vector<1x256xf32> -> vector<1x256xf32>
    %18 = vector.broadcast %17 : vector<1x256xf32> to vector<20x256xf32>
    %19 = arith.mulf %7, %18 : vector<20x256xf32>
    %20 = arith.mulf %17, %17 : vector<1x256xf32>
    %21 = vector.broadcast %20 : vector<1x256xf32> to vector<20x256xf32>
    %22 = arith.mulf %12, %21 : vector<20x256xf32>
    %cst_8 = arith.constant 1.000000e-03 : f32
    %23 = vector.broadcast %cst_8 : f32 to vector<20x256xf32>
    %24 = arith.addf %22, %23 : vector<20x256xf32>
    %c0_9 = arith.constant 0 : index
    %c0_10 = arith.constant 0 : index
    %c0_11 = arith.constant 0 : index
    %25 = vector.load %arg2[%c0_9, %c0_10, %c0_11] : memref<1x1x256xi32, #tpu.memory_space<vmem>>, vector<1x1x256xi32>
    %26 = vector.shape_cast %25 : vector<1x1x256xi32> to vector<1x256xi32>
    %27 = tpu.iota {dimensions = array<i32: 0>} : vector<20x256xi32>
    %28 = vector.broadcast %26 : vector<1x256xi32> to vector<20x256xi32>
    %29 = arith.cmpi eq, %27, %28 : vector<20x256xi32>
    %cst_12 = arith.constant 1.000000e+00 : f32
    %30 = vector.broadcast %cst_12 : f32 to vector<20x256xf32>
    %31 = arith.subf %30, %19 : vector<20x256xf32>
    %cst_13 = arith.constant 0.000000e+00 : f32
    %32 = vector.broadcast %cst_13 : f32 to vector<20x256xf32>
    %33 = arith.subf %32, %19 : vector<20x256xf32>
    %34 = arith.select %29, %31, %33 : vector<20x256xi1>, vector<20x256xf32>
    %cst_14 = arith.constant 9.99999974E-6 : f32
    %35 = vector.broadcast %cst_14 : f32 to vector<20x256xf32>
    %36 = arith.addf %24, %35 : vector<20x256xf32>
    %37 = tpu.reciprocal %36 : vector<20x256xf32> -> vector<20x256xf32>
    %38 = arith.mulf %34, %34 : vector<20x256xf32>
    %39 = arith.mulf %38, %37 : vector<20x256xf32>
    %40 = math.log %36 : vector<20x256xf32>
    %41 = arith.addf %39, %40 : vector<20x256xf32>
    %42 = vector.shape_cast %41 : vector<20x256xf32> to vector<1x20x256xf32>
    %cst_15 = arith.constant dense<0.000000e+00> : vector<1xf32>
    %43 = vector.multi_reduction <add>, %42, %cst_15 [1, 2] : vector<1x20x256xf32> to vector<1xf32>
    %44 = vector.shape_cast %43 : vector<1xf32> to vector<1x1x1xf32>
    %45 = vector.extract %44[0, 0, 0] : f32 from vector<1x1x1xf32>
    %46 = vector.broadcast %45 : f32 to vector<1x1x8x128xf32>
    %c0_16 = arith.constant 0 : index
    %c0_17 = arith.constant 0 : index
    %c0_18 = arith.constant 0 : index
    %c0_19 = arith.constant 0 : index
    %47 = vector.load %arg5[%c0_16, %c0_17, %c0_18, %c0_19] : memref<1x1x8x128xf32, #tpu.memory_space<vmem>>, vector<1x1x8x128xf32>
    tpu.vector_store %arg5[%c0_16, %c0_17, %c0_18, %c0_19], %46 {strides = array<i32>} : memref<1x1x8x128xf32, #tpu.memory_space<vmem>>, vector<1x1x8x128xf32>,
    return
  }
  func.func @transform_0(%arg0: i32, %arg1: i32) -> (i32, i32, i32) {
    %c0_i32 = arith.constant 0 : i32
    %c0_i32_0 = arith.constant 0 : i32
    return %arg0, %c0_i32, %arg1 : i32, i32, i32
  }
  func.func @transform_1(%arg0: i32, %arg1: i32) -> (i32, i32, i32) {
    %c0_i32 = arith.constant 0 : i32
    %c0_i32_0 = arith.constant 0 : i32
    return %arg0, %c0_i32, %arg1 : i32, i32, i32
  }
  func.func @transform_2(%arg0: i32, %arg1: i32) -> (i32, i32, i32) {
    %c0_i32 = arith.constant 0 : i32
    %c0_i32_0 = arith.constant 0 : i32
    return %arg0, %c0_i32, %arg1 : i32, i32, i32
  }
  func.func @transform_3(%arg0: i32, %arg1: i32) -> (i32, i32, i32, i32) {
    %c0_i32 = arith.constant 0 : i32
    %c0_i32_0 = arith.constant 0 : i32
    %c0_i32_1 = arith.constant 0 : i32
    return %arg0, %arg1, %c0_i32, %c0_i32_0 : i32, i32, i32, i32
  }
}

</mosaic_0001>

<llo_original>
// kernel: softmax_heteroscedastic_loss.1
$region0: #{softmax_heteroscedastic_loss.1}
  #allocation0 [shape = 'u32[]', space=smem, size = 0x4, offset = 0x4, fixed_abs, tag = 'smem constant byte address 0x4 - core index']
  #allocation1 [shape = 'u32[144,128]{1,0:T(1,128)}', space=vmem, size = 0x12000, scoped, tag = 'internal scratch']
  %s0 = inlined_call_operand.vmem [shape: s32[2,1,256], index: 0, kind: input, shape index: {}]
  %s1 = inlined_call_operand.vmem [shape: f32[2,20,256], index: 1, kind: input, shape index: {}]
  %s2 = inlined_call_operand.vmem [shape: f32[2,20,256], index: 2, kind: input, shape index: {}]
  %s3 = inlined_call_operand.vmem [shape: f32[2,1,8,128], index: 3, kind: output, shape index: {}]
  %s4 = sld [smem:[#allocation0]]
  $region45: #{softmax_heteroscedastic_loss.1} parent=0
    _
  %s6 = ssub.s32 1, %s4
  %s7 = scalar_select 0, %s6, %s4
  loop: start=0, step=1, limit=4
  $region2: #{softmax_heteroscedastic_loss.1} parent=0 // loop_pre_header
    _
  $region3: #{softmax_heteroscedastic_loss.1} parent=0 // loop_header
    %s9 = sphi 0, %s13
    %p10 = scmp.ge.s32.totalorder %s9, 4
    %s16 = sphi 0, %s28
    %s17 = sphi 0, %s24
    %s18 = sphi 0, %s16
    %s19 = sphi 0, %s17
    %s20 = sphi 0, %s18
    %s21 = sphi 0, %s19
    %s33 = sphi 0, %s35
    %s36 = sphi 0, %s33
    %s37 = sphi 0, %s36
    %s53 = sphi 0, %s37
    %s61 = sphi 0, %s63
    %s64 = sphi 0, %s61
    %s65 = sphi 0, %s64
    %s81 = sphi 0, %s65
    %s89 = sphi 0, %s91
    %s92 = sphi 0, %s89
    %s93 = sphi 0, %s92
    %s109 = sphi 0, %s93
    %s117 = sphi 0, %s119
    %s120 = sphi 0, %s117
    %s121 = sphi 0, %s120
    %s137 = sphi 0, %s121
  $region4: #{softmax_heteroscedastic_loss.1} parent=0 // loop_header_branch
    %12 = sbr.rel (%p10) target = $region8
  $region5: #{softmax_heteroscedastic_loss.1} parent=0 // loop_body
    %s14 = ssub.s32 %s9, 1
    %s15 = ssub.s32 %s9, 2
    %s22 = sadd.s32 1, %s17
    %p23 = scmp.ge.s32.totalorder %s22, 1
    %s24 = scalar_select %p23, 0, %s22
    %s25 = sadd.s32 1, %s16
    %s26 = scalar_select %p23, %s25, %s16
    %p27 = scmp.ge.s32.totalorder %s26, 2
    %s28 = scalar_select %p27, 0, %s26
    %s29 = ssub.s32 %s16, %s28
    %s30 = ssub.s32 %s17, %s24
    %s31 = sor.u32 %s29, %s30
    %p32 = scmp.eq.s32.totalorder %s31, 0
    %s34 = sadd.s32 %s33, 1
    %s35 = scalar_select %p32, %s33, %s34
    %p38 = pneg %p32
    %p39 = scmp.eq.s32.totalorder %s9, 1
    %p40 = por %p38, %p39
    %p41 = scmp.ne.s32.totalorder %s33, %s36
    %p42 = scmp.eq.s32.totalorder %s9, 0
    %p43 = por %p41, %p42
    %p44 = scmp.ne.s32.totalorder %s33, %s36
    %p45 = scmp.eq.s32.totalorder %s14, 1
    %p46 = por %p44, %p45
    %p47 = scmp.ne.s32.totalorder %s36, %s37
    %p48 = scmp.eq.s32.totalorder %s14, 0
    %p49 = por %p47, %p48
    %p50 = scmp.ne.s32.totalorder %s36, %s37
    %p51 = scmp.eq.s32.totalorder %s15, 1
    %p52 = por %p50, %p51
    %p54 = scmp.ne.s32.totalorder %s37, %s53
    %p55 = scmp.eq.s32.totalorder %s15, 0
    %p56 = por %p54, %p55
    %s57 = ssub.s32 %s16, %s28
    %s58 = ssub.s32 %s17, %s24
    %s59 = sor.u32 %s57, %s58
    %p60 = scmp.eq.s32.totalorder %s59, 0
    %s62 = sadd.s32 %s61, 1
    %s63 = scalar_select %p60, %s61, %s62
    %p66 = pneg %p60
    %p67 = scmp.eq.s32.totalorder %s9, 1
    %p68 = por %p66, %p67
    %p69 = scmp.ne.s32.totalorder %s61, %s64
    %p70 = scmp.eq.s32.totalorder %s9, 0
    %p71 = por %p69, %p70
    %p72 = scmp.ne.s32.totalorder %s61, %s64
    %p73 = scmp.eq.s32.totalorder %s14, 1
    %p74 = por %p72, %p73
    %p75 = scmp.ne.s32.totalorder %s64, %s65
    %p76 = scmp.eq.s32.totalorder %s14, 0
    %p77 = por %p75, %p76
    %p78 = scmp.ne.s32.totalorder %s64, %s65
    %p79 = scmp.eq.s32.totalorder %s15, 1
    %p80 = por %p78, %p79
    %p82 = scmp.ne.s32.totalorder %s65, %s81
    %p83 = scmp.eq.s32.totalorder %s15, 0
    %p84 = por %p82, %p83
    %s85 = ssub.s32 %s16, %s28
    %s86 = ssub.s32 %s17, %s24
    %s87 = sor.u32 %s85, %s86
    %p88 = scmp.eq.s32.totalorder %s87, 0
    %s90 = sadd.s32 %s89, 1
    %s91 = scalar_select %p88, %s89, %s90
    %p94 = pneg %p88
    %p95 = scmp.eq.s32.totalorder %s9, 1
    %p96 = por %p94, %p95
    %p97 = scmp.ne.s32.totalorder %s89, %s92
    %p98 = scmp.eq.s32.totalorder %s9, 0
    %p99 = por %p97, %p98
    %p100 = scmp.ne.s32.totalorder %s89, %s92
    %p101 = scmp.eq.s32.totalorder %s14, 1
    %p102 = por %p100, %p101
    %p103 = scmp.ne.s32.totalorder %s92, %s93
    %p104 = scmp.eq.s32.totalorder %s14, 0
    %p105 = por %p103, %p104
    %p106 = scmp.ne.s32.totalorder %s92, %s93
    %p107 = scmp.eq.s32.totalorder %s15, 1
    %p108 = por %p106, %p107
    %p110 = scmp.ne.s32.totalorder %s93, %s109
    %p111 = scmp.eq.s32.totalorder %s15, 0
    %p112 = por %p110, %p111
    %s113 = ssub.s32 %s16, %s28
    %s114 = ssub.s32 %s17, %s24
    %s115 = sor.u32 %s113, %s114
    %p116 = scmp.eq.s32.totalorder %s115, 0
    %s118 = sadd.s32 %s117, 1
    %s119 = scalar_select %p116, %s117, %s118
    %p122 = pneg %p116
    %p123 = scmp.eq.s32.totalorder %s9, 1
    %p124 = por %p122, %p123
    %p125 = scmp.ne.s32.totalorder %s117, %s120
    %p126 = scmp.eq.s32.totalorder %s9, 0
    %p127 = por %p125, %p126
    %p128 = scmp.ne.s32.totalorder %s117, %s120
    %p129 = scmp.eq.s32.totalorder %s14, 1
    %p130 = por %p128, %p129
    %p131 = scmp.ne.s32.totalorder %s120, %s121
    %p132 = scmp.eq.s32.totalorder %s14, 0
    %p133 = por %p131, %p132
    %p134 = scmp.ne.s32.totalorder %s120, %s121
    %p135 = scmp.eq.s32.totalorder %s15, 1
    %p136 = por %p134, %p135
    %p138 = scmp.ne.s32.totalorder %s121, %s137
    %p139 = scmp.eq.s32.totalorder %s15, 0
    %p140 = por %p138, %p139
    %p141 = scmp.le.s32.totalorder 1, %s9
    %p142 = scmp.lt.s32.totalorder %s9, 3
    %p143 = pnand %p141, %p142
    %p144 = pneg %p143
    // Predicated region
    $region9: #{softmax_heteroscedastic_loss.1} parent=5 // pred_check
      _
    $region10: #{softmax_heteroscedastic_loss.1} parent=5 // pred_check_branch
      %146 = sbr.rel (%p143) target = $region12
    $region11: #{softmax_heteroscedastic_loss.1} parent=5 // pred_region
      %s147 = ssub.s32 %s9, 1
    $region12: #{softmax_heteroscedastic_loss.1} parent=5 // pred_fallthru
      _
    %p148 = scmp.lt.s32.totalorder %s9, 2
    // Predicated region
    $region13: #{softmax_heteroscedastic_loss.1} parent=5 // pred_check
      %p149 = pneg %p148
    $region14: #{softmax_heteroscedastic_loss.1} parent=5 // pred_check_branch
      %151 = sbr.rel (%p149) target = $region16
    $region15: #{softmax_heteroscedastic_loss.1} parent=5 // pred_region
      // Predicated region
      $region17: #{softmax_heteroscedastic_loss.1} parent=15 // pred_check
        %p152 = pneg %p43
      $region18: #{softmax_heteroscedastic_loss.1} parent=15 // pred_check_branch
        %154 = sbr.rel (%p152) target = $region20
      $region19: #{softmax_heteroscedastic_loss.1} parent=15 // pred_region
        %s155 = smul.u32 2, %s17
        %p156 = scmp.lt.s32.totalorder %s16, 1
        %s157 = scalar_select %p156, %s16, 1
        %p158 = scmp.lt.s32.totalorder %s155, 1
        %s159 = scalar_select %p158, %s155, 1
        %s160 = smul.addr %s157, 2
        %s161 = sadd.s32 %s159, %s160
        %s162 = scalar_lea.vmem %s0, %s161
        %s163 = smul.u32 2, %s17
      $region20: #{softmax_heteroscedastic_loss.1} parent=15 // pred_fallthru
        _
      // Predicated region
      $region21: #{softmax_heteroscedastic_loss.1} parent=15 // pred_check
        %p164 = pneg %p71
      $region22: #{softmax_heteroscedastic_loss.1} parent=15 // pred_check_branch
        %166 = sbr.rel (%p164) target = $region24
      $region23: #{softmax_heteroscedastic_loss.1} parent=15 // pred_region
        %s167 = smul.u32 2, %s17
        %p168 = scmp.lt.s32.totalorder %s16, 1
        %s169 = scalar_select %p168, %s16, 1
        %p170 = scmp.lt.s32.totalorder %s167, 1
        %s171 = scalar_select %p170, %s167, 1
        %s172 = smul.addr %s169, 6
        %s173 = sadd.s32 %s171, %s172
        %s174 = smul.addr %s173, 8
        %s175 = scalar_lea.vmem %s1, %s174
        %s176 = smul.u32 2, %s17
      $region24: #{softmax_heteroscedastic_loss.1} parent=15 // pred_fallthru
        _
      // Predicated region
      $region25: #{softmax_heteroscedastic_loss.1} parent=15 // pred_check
        %p177 = pneg %p99
      $region26: #{softmax_heteroscedastic_loss.1} parent=15 // pred_check_branch
        %179 = sbr.rel (%p177) target = $region28
      $region27: #{softmax_heteroscedastic_loss.1} parent=15 // pred_region
        %s180 = smul.u32 2, %s17
        %p181 = scmp.lt.s32.totalorder %s16, 1
        %s182 = scalar_select %p181, %s16, 1
        %p183 = scmp.lt.s32.totalorder %s180, 1
        %s184 = scalar_select %p183, %s180, 1
        %s185 = smul.addr %s182, 6
        %s186 = sadd.s32 %s184, %s185
        %s187 = smul.addr %s186, 8
        %s188 = scalar_lea.vmem %s2, %s187
        %s189 = smul.u32 2, %s17
      $region28: #{softmax_heteroscedastic_loss.1} parent=15 // pred_fallthru
        _
    $region16: #{softmax_heteroscedastic_loss.1} parent=5 // pred_fallthru
      _
    %p190 = scmp.le.s32.totalorder 1, %s9
    %p191 = scmp.lt.s32.totalorder %s9, 3
    %p192 = pnand %p190, %p191
    %p193 = pneg %p192
    // Predicated region
    $region29: #{softmax_heteroscedastic_loss.1} parent=5 // pred_check
      _
    $region30: #{softmax_heteroscedastic_loss.1} parent=5 // pred_check_branch
      %195 = sbr.rel (%p192) target = $region32
    $region31: #{softmax_heteroscedastic_loss.1} parent=5 // pred_region
      %s196 = ssub.s32 %s9, 1
      %s197 = smul.u32 2, %s19
      %p198 = scmp.lt.s32.totalorder %s18, 1
      %s199 = scalar_select %p198, %s18, 1
      %p200 = scmp.lt.s32.totalorder %s197, 1
      %s201 = scalar_select %p200, %s197, 1
      %s202 = smul.addr %s199, 2
      %s203 = sadd.s32 %s201, %s202
      %s204 = scalar_lea.vmem %s0, %s203
      %p205 = pneg %p49
      %p206 = pneg %p46
      %s207 = smul.u32 2, %s19
      %p208 = scmp.lt.s32.totalorder %s18, 1
      %s209 = scalar_select %p208, %s18, 1
      %p210 = scmp.lt.s32.totalorder %s207, 1
      %s211 = scalar_select %p210, %s207, 1
      %s212 = smul.addr %s209, 6
      %s213 = sadd.s32 %s211, %s212
      %s214 = smul.addr %s213, 8
      %s215 = scalar_lea.vmem %s1, %s214
      %p216 = pneg %p77
      %p217 = pneg %p74
      %s218 = smul.u32 2, %s19
      %p219 = scmp.lt.s32.totalorder %s18, 1
      %s220 = scalar_select %p219, %s18, 1
      %p221 = scmp.lt.s32.totalorder %s218, 1
      %s222 = scalar_select %p221, %s218, 1
      %s223 = smul.addr %s220, 6
      %s224 = sadd.s32 %s222, %s223
      %s225 = smul.addr %s224, 8
      %s226 = scalar_lea.vmem %s2, %s225
      %p227 = pneg %p105
      %p228 = pneg %p102
      %p229 = pneg %p133
      %p230 = pneg %p130
      %p231 = scmp.lt.s32.totalorder %s18, 1
      %s232 = scalar_select %p231, %s18, 1
      %p233 = scmp.lt.s32.totalorder %s19, 0
      %s234 = scalar_select %p233, %s19, 0
      %s235 = sadd.s32 %s234, %s232
      %s236 = smul.addr %s235, 8
      %s237 = scalar_lea.vmem %s3, %s236
      %s238 = smul.u32 2, %s19
      %p239 = scmp.lt.s32.totalorder %s18, 1
      %s240 = scalar_select %p239, %s18, 1
      %p241 = scmp.lt.s32.totalorder %s238, 1
      %s242 = scalar_select %p241, %s238, 1
      %s243 = smul.addr %s240, 2
      %s244 = sadd.s32 %s242, %s243
      %s245 = scalar_lea.vmem %s0, %s244
      %s246 = smul.u32 2, %s19
      %s247 = smul.u32 2, %s19
      %p248 = scmp.lt.s32.totalorder %s18, 1
      %s249 = scalar_select %p248, %s18, 1
      %p250 = scmp.lt.s32.totalorder %s247, 1
      %s251 = scalar_select %p250, %s247, 1
      %s252 = smul.addr %s249, 6
      %s253 = sadd.s32 %s251, %s252
      %s254 = smul.addr %s253, 8
      %s255 = scalar_lea.vmem %s1, %s254
      %s256 = smul.u32 2, %s19
      %s257 = smul.u32 2, %s19
      %p258 = scmp.lt.s32.totalorder %s18, 1
      %s259 = scalar_select %p258, %s18, 1
      %p260 = scmp.lt.s32.totalorder %s257, 1
      %s261 = scalar_select %p260, %s257, 1
      %s262 = smul.addr %s259, 6
      %s263 = sadd.s32 %s261, %s262
      %s264 = smul.addr %s263, 8
      %s265 = scalar_lea.vmem %s2, %s264
      %s266 = smul.u32 2, %s19
      %p267 = scmp.lt.s32.totalorder %s18, 1
      %s268 = scalar_select %p267, %s18, 1
      %p269 = scmp.lt.s32.totalorder %s19, 0
      %s270 = scalar_select %p269, %s19, 0
      %s271 = sadd.s32 %s270, %s268
      %s272 = smul.addr %s271, 8
      %s273 = scalar_lea.vmem %s3, %s272
      %v274 = vld [vmem:[%s255] sm:$0xff]
      %v275 = vld [vmem:[%s255 + $0x8] sm:$0xff]
      %v276 = vld [vmem:[%s255 + $0x10] sm:$0xff]
      %v277 = vld [vmem:[%s255 + $0x18] sm:$0xff]
      %v278 = vld [vmem:[%s255 + $0x20] sm:$0xf]
      %v279 = vld [vmem:[%s255 + $0x28] sm:$0xf]
      %v280 = vld [vmem:[%s265] sm:$0xff]
      %v281 = vld [vmem:[%s265 + $0x8] sm:$0xff]
      %v282 = vld [vmem:[%s265 + $0x10] sm:$0xff]
      %v283 = vld [vmem:[%s265 + $0x18] sm:$0xff]
      %v284 = vld [vmem:[%s265 + $0x20] sm:$0xf]
      %v285 = vld [vmem:[%s265 + $0x28] sm:$0xf]
      %v286 = vmul.f32 %v280, 0.5
      %v287 = vmul.f32 %v281, 0.5
      %v288 = vmul.f32 %v282, 0.5
      %v289 = vmul.f32 %v283, 0.5
      %v290 = vmul.f32 %v284, 0.5
      %v291 = vmul.f32 %v285, 0.5
      %v292 = vadd.f32 %v274, %v286
      %v293 = vadd.f32 %v275, %v287
      %v294 = vadd.f32 %v276, %v288
      %v295 = vadd.f32 %v277, %v289
      %v296 = vadd.f32 %v278, %v290
      %v297 = vadd.f32 %v279, %v291
      %v298 = vmul.f32 %v292, 1.442695
      %v299 = vpow.pop %v298
      %v300 = vmul.f32 %v293, 1.442695
      %v301 = vpow.pop %v300
      %v302 = vmul.f32 %v294, 1.442695
      %v303 = vpow.pop %v302
      %v304 = vmul.f32 %v295, 1.442695
      %v305 = vpow.pop %v304
      %v306 = vmul.f32 %v296, 1.442695
      %v307 = vpow.pop %v306
      %v308 = vmul.f32 %v297, 1.442695
      %v309 = vpow.pop %v308
      %v310 = vmul.f32 %v299, %v299
      %v311 = vmul.f32 %v301, %v301
      %v312 = vmul.f32 %v303, %v303
      %v313 = vmul.f32 %v305, %v305
      %v314 = vmul.f32 %v307, %v307
      %v315 = vmul.f32 %v309, %v309
      %v316 = vmul.f32 %v280, 1.442695
      %v317 = vpow.pop %v316
      %v318 = vmul.f32 %v281, 1.442695
      %v319 = vpow.pop %v318
      %v320 = vmul.f32 %v282, 1.442695
      %v321 = vpow.pop %v320
      %v322 = vmul.f32 %v283, 1.442695
      %v323 = vpow.pop %v322
      %v324 = vmul.f32 %v284, 1.442695
      %v325 = vpow.pop %v324
      %v326 = vmul.f32 %v285, 1.442695
      %v327 = vpow.pop %v326
      %v328 = vsub.f32 %v317, 1.0
      %v329 = vsub.f32 %v319, 1.0
      %v330 = vsub.f32 %v321, 1.0
      %v331 = vsub.f32 %v323, 1.0
      %v332 = vsub.f32 %v325, 1.0
      %v333 = vsub.f32 %v327, 1.0
      %v334 = vmul.f32 %v310, %v328
      %v335 = vmul.f32 %v311, %v329
      %v336 = vmul.f32 %v312, %v330
      %v337 = vmul.f32 %v313, %v331
      %v338 = vmul.f32 %v314, %v332
      %v339 = vmul.f32 %v315, %v333
      %v340 = vadd.f32 %v299, %v303
      %vm341 = vcmask 1043456
      %v342 = vsel %vm341, %v307, 0.0
      %v343 = vadd.f32 %v340, %v342
      %v344 = vrot.slane %v343, 4
      %v345 = vadd.f32 %v343, %v344
      %v346 = vrot.slane %v345, 2
      %v347 = vadd.f32 %v345, %v346
      %v348 = vrot.slane %v347, 1
      %v349 = vadd.f32 %v347, %v348
      %v350 = vadd.f32 %v301, %v305
      %v351 = vsel %vm341, %v309, 0.0
      %v352 = vadd.f32 %v350, %v351
      %v353 = vrot.slane %v352, 4
      %v354 = vadd.f32 %v352, %v353
      %v355 = vrot.slane %v354, 2
      %v356 = vadd.f32 %v354, %v355
      %v357 = vrot.slane %v356, 1
      %v358 = vadd.f32 %v356, %v357
      %v359 = vadd.f32 %v349, 1e-05
      %v360 = vadd.f32 %v358, 1e-05
      %v361 = vrcp.pop %v359
      %v362 = vrcp.pop %v360
      %v363 = vmul.f32 %v299, %v361
      %v364 = vmul.f32 %v301, %v362
      %v365 = vmul.f32 %v303, %v361
      %v366 = vmul.f32 %v305, %v362
      %v367 = vmul.f32 %v307, %v361
      %v368 = vmul.f32 %v309, %v362
      %v369 = vmul.f32 %v361, %v361
      %v370 = vmul.f32 %v362, %v362
      %v371 = vmul.f32 %v334, %v369
      %v372 = vmul.f32 %v335, %v370
      %v373 = vmul.f32 %v336, %v369
      %v374 = vmul.f32 %v337, %v370
      %v375 = vmul.f32 %v338, %v369
      %v376 = vmul.f32 %v339, %v370
      %v377 = vadd.f32 %v371, 0.001
      %v378 = vadd.f32 %v372, 0.001
      %v379 = vadd.f32 %v373, 0.001
      %v380 = vadd.f32 %v374, 0.001
      %v381 = vadd.f32 %v375, 0.001
      %v382 = vadd.f32 %v376, 0.001
      %v383 = vld [vmem:[%s245] sm:$0x3]
      %v384 = vlaneseq
      %v385 = vshrl.u32 %v384, 7
      %v386 = vadd.s32 %v385, 8
      %v387 = vadd.s32 %v385, 16
      %v388 = vlaneseq
      %v389 = vshrl.u32 %v388, 7
      %v390 = vsub.s32 0, %v389
      %v391 = vrot.slane %v383, %v390
      %v392 = vlaneseq
      %v393 = vshrl.u32 %v392, 7
      %v394 = vsub.s32 1, %v393
      %v395 = vrot.slane %v383, %v394
      %vm396 = vcmp.eq.s32.totalorder %v385, %v391
      %vm397 = vcmp.eq.s32.totalorder %v385, %v395
      %vm398 = vcmp.eq.s32.totalorder %v386, %v391
      %vm399 = vcmp.eq.s32.totalorder %v386, %v395
      %vm400 = vcmp.eq.s32.totalorder %v387, %v391
      %vm401 = vcmp.eq.s32.totalorder %v387, %v395
      %v402 = vsub.f32 1.0, %v363
      %v403 = vsub.f32 1.0, %v364
      %v404 = vsub.f32 1.0, %v365
      %v405 = vsub.f32 1.0, %v366
      %v406 = vsub.f32 1.0, %v367
      %v407 = vsub.f32 1.0, %v368
      %v408 = vsub.f32 0.0, %v363
      %v409 = vsub.f32 0.0, %v364
      %v410 = vsub.f32 0.0, %v365
      %v411 = vsub.f32 0.0, %v366
      %v412 = vsub.f32 0.0, %v367
      %v413 = vsub.f32 0.0, %v368
      %v414 = vsel %vm396, %v402, %v408
      %v415 = vsel %vm397, %v403, %v409
      %v416 = vsel %vm398, %v404, %v410
      %v417 = vsel %vm399, %v405, %v411
      %v418 = vsel %vm400, %v406, %v412
      %v419 = vsel %vm401, %v407, %v413
      %v420 = vadd.f32 %v377, 1e-05
      %v421 = vadd.f32 %v378, 1e-05
      %v422 = vadd.f32 %v379, 1e-05
      %v423 = vadd.f32 %v380, 1e-05
      %v424 = vadd.f32 %v381, 1e-05
      %v425 = vadd.f32 %v382, 1e-05
      %v426 = vrcp.pop %v420
      %v427 = vrcp.pop %v421
      %v428 = vrcp.pop %v422
      %v429 = vrcp.pop %v423
      %v430 = vrcp.pop %v424
      %v431 = vrcp.pop %v425
      %v432 = vmul.f32 %v414, %v414
      %v433 = vmul.f32 %v415, %v415
      %v434 = vmul.f32 %v416, %v416
      %v435 = vmul.f32 %v417, %v417
      %v436 = vmul.f32 %v418, %v418
      %v437 = vmul.f32 %v419, %v419
      %v438 = vmul.f32 %v432, %v426
      %v439 = vmul.f32 %v433, %v427
      %v440 = vmul.f32 %v434, %v428
      %v441 = vmul.f32 %v435, %v429
      %v442 = vmul.f32 %v436, %v430
      %v443 = vmul.f32 %v437, %v431
      %v444 = vlog2.pop %v420
      %v445 = vmul.f32 %v444, 0.6931472
      %v446 = vlog2.pop %v421
      %v447 = vmul.f32 %v446, 0.6931472
      %v448 = vlog2.pop %v422
      %v449 = vmul.f32 %v448, 0.6931472
      %v450 = vlog2.pop %v423
      %v451 = vmul.f32 %v450, 0.6931472
      %v452 = vlog2.pop %v424
      %v453 = vmul.f32 %v452, 0.6931472
      %v454 = vlog2.pop %v425
      %v455 = vmul.f32 %v454, 0.6931472
      %v456 = vadd.f32 %v438, %v445
      %v457 = vadd.f32 %v439, %v447
      %v458 = vadd.f32 %v440, %v449
      %v459 = vadd.f32 %v441, %v451
      %v460 = vadd.f32 %v442, %v453
      %v461 = vadd.f32 %v443, %v455
      %v462 = vadd.f32 %v456, %v457
      %v463 = vadd.f32 %v462, %v458
      %v464 = vadd.f32 %v463, %v459
      %v465 = vsel %vm341, %v460, 0.0
      %v466 = vadd.f32 %v464, %v465
      %v467 = vsel %vm341, %v461, 0.0
      %v468 = vadd.f32 %v466, %v467
      %469 = vadd.xlane.f32.xlu0 %v468
      %v470 = vpop.xlane.xlu0 %469
      %v471 = vrot.slane %v470, 4
      %v472 = vadd.f32 %v470, %v471
      %v473 = vrot.slane %v472, 2
      %v474 = vadd.f32 %v472, %v473
      %v475 = vrot.slane %v474, 1
      %v476 = vadd.f32 %v474, %v475
      %s477 = vtos %v476
      %v478 = vstv %s477
      %479 = vst [vmem:[%s273] sm:$0xff] %v478
      %p480 = scmp.lt.s32.totalorder %s18, 1
      %s481 = scalar_select %p480, %s18, 1
      %p482 = scmp.lt.s32.totalorder %s19, 0
      %s483 = scalar_select %p482, %s19, 0
      %s484 = sadd.s32 %s483, %s481
      %s485 = smul.addr %s484, 8
      %s486 = scalar_lea.vmem %s3, %s485
      // Predicated region
      $region33: #{softmax_heteroscedastic_loss.1} parent=31 // pred_check
        %p487 = pneg %p130
      $region34: #{softmax_heteroscedastic_loss.1} parent=31 // pred_check_branch
        %489 = sbr.rel (%p487) target = $region36
      $region35: #{softmax_heteroscedastic_loss.1} parent=31 // pred_region
        _
      $region36: #{softmax_heteroscedastic_loss.1} parent=31 // pred_fallthru
        _
    $region32: #{softmax_heteroscedastic_loss.1} parent=5 // pred_fallthru
      _
    %p490 = scmp.le.s32.totalorder 2, %s9
    // Predicated region
    $region37: #{softmax_heteroscedastic_loss.1} parent=5 // pred_check
      %p491 = pneg %p490
    $region38: #{softmax_heteroscedastic_loss.1} parent=5 // pred_check_branch
      %493 = sbr.rel (%p491) target = $region40
    $region39: #{softmax_heteroscedastic_loss.1} parent=5 // pred_region
      %s494 = ssub.s32 %s9, 2
      // Predicated region
      $region41: #{softmax_heteroscedastic_loss.1} parent=39 // pred_check
        %p495 = pneg %p136
      $region42: #{softmax_heteroscedastic_loss.1} parent=39 // pred_check_branch
        %497 = sbr.rel (%p495) target = $region44
      $region43: #{softmax_heteroscedastic_loss.1} parent=39 // pred_region
        %p498 = scmp.lt.s32.totalorder %s20, 1
        %s499 = scalar_select %p498, %s20, 1
        %p500 = scmp.lt.s32.totalorder %s21, 0
        %s501 = scalar_select %p500, %s21, 0
        %s502 = sadd.s32 %s501, %s499
        %s503 = smul.addr %s502, 8
        %s504 = scalar_lea.vmem %s3, %s503
      $region44: #{softmax_heteroscedastic_loss.1} parent=39 // pred_fallthru
        _
    $region40: #{softmax_heteroscedastic_loss.1} parent=5 // pred_fallthru
      _
  $region6: #{softmax_heteroscedastic_loss.1} parent=0 // loop_footer
    %s13 = sadd.s32 1, %s9
  $region7: #{softmax_heteroscedastic_loss.1} parent=0 // loop_footer_branch
    %8 = sbr.rel target = $region3
  $region8: #{softmax_heteroscedastic_loss.1} parent=0 // loop_exit
    _

</llo_original>
